<compile_context>
chip_gen: v6e
topology: v6e:2x2x1
jax: 0.10.0
libtpu: 0.0.40
codegen_flags: <defaults>
</compile_context>

<pallas_src>
import jax
import jax.numpy as jnp
from jax import lax
from jax.experimental import pallas as pl
from jax.experimental.pallas import tpu as pltpu


def gru_kernel(x_ref, wih_ref, whh_ref, bih_ref, bhh_ref, out_ref, gi_ref):
    """Full GRU forward in a single kernel invocation.

    x_ref   : (G*Np, C)   time-major flattened input; rows [t*Np, (t+1)*Np) = timestep t
    wih_ref : (C, 3H)     transposed weight_ih_l0 (gate order: r, z, n)
    whh_ref : (H, 3H)     transposed weight_hh_l0
    bih_ref : (1, 3H)     bias_ih_l0
    bhh_ref : (1, 3H)     bias_hh_l0
    out_ref : (Np, H)     final hidden state (always written)
    gi_ref  : (G*Np, 3H)  VMEM scratch holding the hoisted input projection
    """
    n_pad, hidden = out_ref.shape
    seq_len = x_ref.shape[0] // n_pad

    # Phase 1: hoisted input projection -- one large, MXU-friendly GEMM for ALL timesteps.
    gi_ref[...] = (
        jnp.dot(x_ref[...], wih_ref[...], preferred_element_type=jnp.float32)
        + bih_ref[...]
    )

    # Recurrent weights/bias stay resident in vregs/VMEM across the whole loop.
    whh = whh_ref[...]          # (H, 3H)
    bhh = bhh_ref[...]          # (1, 3H)

    # Phase 2: sequential recurrence, fully inside the kernel (no per-step grid overhead).
    def step(t, h):
        start = pl.multiple_of(t * n_pad, n_pad)        # n_pad % 8 == 0 -> sublane aligned
        gi = gi_ref[pl.ds(start, n_pad), :]             # (Np, 3H) precomputed input gates
        gh = jnp.dot(h, whh, preferred_element_type=jnp.float32) + bhh   # (Np, 3H)

        # PyTorch nn.GRU gate equations (gate order r, z, n); r and z fused in one sigmoid.
        rz = jax.nn.sigmoid(gi[:, : 2 * hidden] + gh[:, : 2 * hidden])   # (Np, 2H)
        r = rz[:, :hidden]
        z = rz[:, hidden:]
        n = jnp.tanh(gi[:, 2 * hidden:] + r * gh[:, 2 * hidden:])
        return (1.0 - z) * n + z * h

    h0 = jnp.zeros((n_pad, hidden), jnp.float32)
    h_last = lax.fori_loop(0, seq_len, step, h0, unroll=True)

    out_ref[...] = h_last.astype(out_ref.dtype)


def gallery_gru_combination(galleries, w_ih, w_hh, b_ih, b_hh):
    """Equivalent of GalleryGRUCombinationLayer.forward.

    galleries : (N, G, C) batch-first (same as the PyTorch module)
    w_ih      : (3H, C)   = gru.weight_ih_l0
    w_hh      : (3H, H)   = gru.weight_hh_l0
    b_ih      : (3H,)     = gru.bias_ih_l0
    b_hh      : (3H,)     = gru.bias_hh_l0
    returns   : (N, H)    last-timestep hidden state
    """
    N, G, C = galleries.shape
    H = w_hh.shape[1]

    # Pad batch to a multiple of 8 sublanes so per-timestep slabs are tile-aligned.
    n_pad = max(8, ((N + 7) // 8) * 8)

    x = galleries.astype(jnp.float32)
    if n_pad != N:
        x = jnp.pad(x, ((0, n_pad - N), (0, 0), (0, 0)))

    # Time-major flatten: row block [t*Np, (t+1)*Np) is timestep t.  This single pass lets
    # the kernel read each timestep's projected slab as a contiguous aligned row block.
    x_flat = jnp.transpose(x, (1, 0, 2)).reshape(G * n_pad, C)

    wih_t = jnp.transpose(w_ih).astype(jnp.float32)       # (C, 3H)
    whh_t = jnp.transpose(w_hh).astype(jnp.float32)       # (H, 3H)
    bih = b_ih.reshape(1, 3 * H).astype(jnp.float32)
    bhh = b_hh.reshape(1, 3 * H).astype(jnp.float32)

    out = pl.pallas_call(
        gru_kernel,
        out_shape=jax.ShapeDtypeStruct((n_pad, H), jnp.float32),
        grid_spec=pltpu.PrefetchScalarGridSpec(
            num_scalar_prefetch=0,
            grid=(1,),                                     # whole problem in one invocation
            in_specs=[
                pl.BlockSpec((G * n_pad, C), lambda i: (0, 0)),
                pl.BlockSpec((C, 3 * H), lambda i: (0, 0)),
                pl.BlockSpec((H, 3 * H), lambda i: (0, 0)),
                pl.BlockSpec((1, 3 * H), lambda i: (0, 0)),
                pl.BlockSpec((1, 3 * H), lambda i: (0, 0)),
            ],
            out_specs=pl.BlockSpec((n_pad, H), lambda i: (0, 0)),
            scratch_shapes=[pltpu.VMEM((G * n_pad, 3 * H), jnp.float32)],
        ),
        compiler_params=pltpu.CompilerParams(
            dimension_semantics=("arbitrary",),
        ),
    )(x_flat, wih_t, whh_t, bih, bhh)

    return out[:N]


def gru_reference(galleries, w_ih, w_hh, b_ih, b_hh):
    """Pure-JAX reference matching torch.nn.GRU (num_layers=1, batch_first=True)."""
    N, G, C = galleries.shape
    H = w_hh.shape[1]
    wih_t = jnp.transpose(w_ih)
    whh_t = jnp.transpose(w_hh)

    def step(h, x_t):
        gi = x_t @ wih_t + b_ih
        gh = h @ whh_t + b_hh
        r = jax.nn.sigmoid(gi[:, :H] + gh[:, :H])
        z = jax.nn.sigmoid(gi[:, H:2 * H] + gh[:, H:2 * H])
        n = jnp.tanh(gi[:, 2 * H:] + r * gh[:, 2 * H:])
        h_new = (1.0 - z) * n + z * h
        return h_new, None

    h0 = jnp.zeros((N, H), jnp.float32)
    x_tm = jnp.transpose(galleries, (1, 0, 2))
    h_last, _ = jax.lax.scan(step, h0, x_tm)
    return h_last


if __name__ == "__main__":
    # Small shapes: N objects, gallery size G, embedding size C, hidden size H.
    N, G, C, H = 4, 8, 16, 32

    key = jax.random.PRNGKey(0)
    k_x, k_wih, k_whh, k_bih, k_bhh = jax.random.split(key, 5)

    galleries = jax.random.normal(k_x, (N, G, C), dtype=jnp.float32)

    # Deterministic init matching nn.GRU's uniform(-1/sqrt(H), 1/sqrt(H)).
    bound = 1.0 / (H ** 0.5)
    w_ih = jax.random.uniform(k_wih, (3 * H, C), jnp.float32, -bound, bound)
    w_hh = jax.random.uniform(k_whh, (3 * H, H), jnp.float32, -bound, bound)
    b_ih = jax.random.uniform(k_bih, (3 * H,), jnp.float32, -bound, bound)
    b_hh = jax.random.uniform(k_bhh, (3 * H,), jnp.float32, -bound, bound)

    out = gallery_gru_combination(galleries, w_ih, w_hh, b_ih, b_hh)
    out = jax.block_until_ready(out)

    ref = gru_reference(galleries, w_ih, w_hh, b_ih, b_hh)
    assert out.shape == (N, H)
    assert jnp.allclose(out, ref, atol=1e-5, rtol=1e-5), "mismatch vs reference GRU"

    print("KERNEL_OK")
</pallas_src>

<mosaic_0001>
module attributes {stable_mosaic.version = 11 : i64} {
  func.func @gru_kernel(%arg0: i32, %arg1: memref<64x16xf32, #tpu.memory_space<vmem>>, %arg2: memref<16x96xf32, #tpu.memory_space<vmem>>, %arg3: memref<32x96xf32, #tpu.memory_space<vmem>>, %arg4: memref<1x96xf32, #tpu.memory_space<vmem>>, %arg5: memref<1x96xf32, #tpu.memory_space<vmem>>, %arg6: memref<8x32xf32, #tpu.memory_space<vmem>>, %arg7: memref<64x96xf32, #tpu.memory_space<vmem>>) attributes {dimension_semantics = [#tpu.dimension_semantics<arbitrary>], iteration_bounds = array<i64: 1>, scalar_prefetch = 0 : i64, scratch_operands = 1 : i64, tpu.core_type = #tpu.core_type<tc>, window_params = [{pipeline_mode = #tpu.pipeline_mode<synchronous>, transform_indices = @transform_0, window_bounds = array<i64: 64, 16>}, {pipeline_mode = #tpu.pipeline_mode<synchronous>, transform_indices = @transform_1, window_bounds = array<i64: 16, 96>}, {pipeline_mode = #tpu.pipeline_mode<synchronous>, transform_indices = @transform_2, window_bounds = array<i64: 32, 96>}, {pipeline_mode = #tpu.pipeline_mode<synchronous>, transform_indices = @transform_3, window_bounds = array<i64: 1, 96>}, {pipeline_mode = #tpu.pipeline_mode<synchronous>, transform_indices = @transform_4, window_bounds = array<i64: 1, 96>}, {pipeline_mode = #tpu.pipeline_mode<synchronous>, transform_indices = @transform_5, window_bounds = array<i64: 8, 32>}]} {
    %c0 = arith.constant 0 : index
    %c0_0 = arith.constant 0 : index
    %0 = vector.load %arg1[%c0, %c0_0] : memref<64x16xf32, #tpu.memory_space<vmem>>, vector<64x16xf32>
    %c0_1 = arith.constant 0 : index
    %c0_2 = arith.constant 0 : index
    %1 = vector.load %arg2[%c0_1, %c0_2] : memref<16x96xf32, #tpu.memory_space<vmem>>, vector<16x96xf32>
    %cst = arith.constant dense<0.000000e+00> : vector<64x96xf32>
    %2 = tpu.matmul %0, %1, %cst {dimension_numbers = #tpu.dot_dimension_numbers<[1], [0], [0], [1], [0, 0, 1, 1], [], []>} : vector<64x16xf32>, vector<16x96xf32>, vector<64x96xf32> -> vector<64x96xf32>
    %c0_3 = arith.constant 0 : index
    %c0_4 = arith.constant 0 : index
    %3 = vector.load %arg4[%c0_3, %c0_4] : memref<1x96xf32, #tpu.memory_space<vmem>>, vector<1x96xf32>
    %4 = vector.broadcast %3 : vector<1x96xf32> to vector<64x96xf32>
    %5 = arith.addf %2, %4 : vector<64x96xf32>
    %c0_5 = arith.constant 0 : index
    %c0_6 = arith.constant 0 : index
    %6 = vector.load %arg7[%c0_5, %c0_6] : memref<64x96xf32, #tpu.memory_space<vmem>>, vector<64x96xf32>
    tpu.vector_store %arg7[%c0_5, %c0_6], %5 {strides = array<i32>} : memref<64x96xf32, #tpu.memory_space<vmem>>, vector<64x96xf32>,
    %c0_7 = arith.constant 0 : index
    %c0_8 = arith.constant 0 : index
    %7 = vector.load %arg3[%c0_7, %c0_8] : memref<32x96xf32, #tpu.memory_space<vmem>>, vector<32x96xf32>
    %c0_9 = arith.constant 0 : index
    %c0_10 = arith.constant 0 : index
    %8 = vector.load %arg5[%c0_9, %c0_10] : memref<1x96xf32, #tpu.memory_space<vmem>>, vector<1x96xf32>
    %cst_11 = arith.constant 0.000000e+00 : f32
    %9 = vector.broadcast %cst_11 : f32 to vector<8x32xf32>
    %c0_i32 = arith.constant 0 : i32
    %c8_i32 = arith.constant 8 : i32
    %10 = arith.muli %c0_i32, %c8_i32 : i32
    %11 = tpu.assume_multiple %10, 8 : i32
    %12 = arith.index_cast %11 : i32 to index
    %c0_12 = arith.constant 0 : index
    %13 = vector.load %arg7[%12, %c0_12] : memref<64x96xf32, #tpu.memory_space<vmem>>, vector<8x96xf32>
    %cst_13 = arith.constant dense<0.000000e+00> : vector<8x96xf32>
    %14 = tpu.matmul %9, %7, %cst_13 {dimension_numbers = #tpu.dot_dimension_numbers<[1], [0], [0], [1], [0, 0, 1, 1], [], []>} : vector<8x32xf32>, vector<32x96xf32>, vector<8x96xf32> -> vector<8x96xf32>
    %15 = vector.broadcast %8 : vector<1x96xf32> to vector<8x96xf32>
    %16 = arith.addf %14, %15 : vector<8x96xf32>
    %17 = vector.extract_strided_slice %13 {offsets = [0, 0], sizes = [8, 64], strides = [1, 1]} : vector<8x96xf32> to vector<8x64xf32>
    %18 = vector.extract_strided_slice %16 {offsets = [0, 0], sizes = [8, 64], strides = [1, 1]} : vector<8x96xf32> to vector<8x64xf32>
    %19 = arith.addf %17, %18 : vector<8x64xf32>
    %20 = arith.negf %19 : vector<8x64xf32>
    %21 = math.exp %20 : vector<8x64xf32>
    %cst_14 = arith.constant 1.000000e+00 : f32
    %22 = vector.broadcast %cst_14 : f32 to vector<8x64xf32>
    %23 = arith.addf %22, %21 : vector<8x64xf32>
    %24 = arith.divf %22, %23 : vector<8x64xf32>
    %25 = vector.extract_strided_slice %24 {offsets = [0, 0], sizes = [8, 32], strides = [1, 1]} : vector<8x64xf32> to vector<8x32xf32>
    %26 = vector.extract_strided_slice %24 {offsets = [0, 32], sizes = [8, 32], strides = [1, 1]} : vector<8x64xf32> to vector<8x32xf32>
    %27 = vector.extract_strided_slice %13 {offsets = [0, 64], sizes = [8, 32], strides = [1, 1]} : vector<8x96xf32> to vector<8x32xf32>
    %28 = vector.extract_strided_slice %16 {offsets = [0, 64], sizes = [8, 32], strides = [1, 1]} : vector<8x96xf32> to vector<8x32xf32>
    %29 = arith.mulf %25, %28 : vector<8x32xf32>
    %30 = arith.addf %27, %29 : vector<8x32xf32>
    %31 = math.tanh %30 : vector<8x32xf32>
    %cst_15 = arith.constant 1.000000e+00 : f32
    %32 = vector.broadcast %cst_15 : f32 to vector<8x32xf32>
    %33 = arith.subf %32, %26 : vector<8x32xf32>
    %34 = arith.mulf %33, %31 : vector<8x32xf32>
    %35 = arith.mulf %26, %9 : vector<8x32xf32>
    %36 = arith.addf %34, %35 : vector<8x32xf32>
    %c1_i32 = arith.constant 1 : i32
    %c8_i32_16 = arith.constant 8 : i32
    %37 = arith.muli %c1_i32, %c8_i32_16 : i32
    %38 = tpu.assume_multiple %37, 8 : i32
    %39 = arith.index_cast %38 : i32 to index
    %c0_17 = arith.constant 0 : index
    %40 = vector.load %arg7[%39, %c0_17] : memref<64x96xf32, #tpu.memory_space<vmem>>, vector<8x96xf32>
    %cst_18 = arith.constant dense<0.000000e+00> : vector<8x96xf32>
    %41 = tpu.matmul %36, %7, %cst_18 {dimension_numbers = #tpu.dot_dimension_numbers<[1], [0], [0], [1], [0, 0, 1, 1], [], []>} : vector<8x32xf32>, vector<32x96xf32>, vector<8x96xf32> -> vector<8x96xf32>
    %42 = vector.broadcast %8 : vector<1x96xf32> to vector<8x96xf32>
    %43 = arith.addf %41, %42 : vector<8x96xf32>
    %44 = vector.extract_strided_slice %40 {offsets = [0, 0], sizes = [8, 64], strides = [1, 1]} : vector<8x96xf32> to vector<8x64xf32>
    %45 = vector.extract_strided_slice %43 {offsets = [0, 0], sizes = [8, 64], strides = [1, 1]} : vector<8x96xf32> to vector<8x64xf32>
    %46 = arith.addf %44, %45 : vector<8x64xf32>
    %47 = arith.negf %46 : vector<8x64xf32>
    %48 = math.exp %47 : vector<8x64xf32>
    %cst_19 = arith.constant 1.000000e+00 : f32
    %49 = vector.broadcast %cst_19 : f32 to vector<8x64xf32>
    %50 = arith.addf %49, %48 : vector<8x64xf32>
    %51 = arith.divf %49, %50 : vector<8x64xf32>
    %52 = vector.extract_strided_slice %51 {offsets = [0, 0], sizes = [8, 32], strides = [1, 1]} : vector<8x64xf32> to vector<8x32xf32>
    %53 = vector.extract_strided_slice %51 {offsets = [0, 32], sizes = [8, 32], strides = [1, 1]} : vector<8x64xf32> to vector<8x32xf32>
    %54 = vector.extract_strided_slice %40 {offsets = [0, 64], sizes = [8, 32], strides = [1, 1]} : vector<8x96xf32> to vector<8x32xf32>
    %55 = vector.extract_strided_slice %43 {offsets = [0, 64], sizes = [8, 32], strides = [1, 1]} : vector<8x96xf32> to vector<8x32xf32>
    %56 = arith.mulf %52, %55 : vector<8x32xf32>
    %57 = arith.addf %54, %56 : vector<8x32xf32>
    %58 = math.tanh %57 : vector<8x32xf32>
    %cst_20 = arith.constant 1.000000e+00 : f32
    %59 = vector.broadcast %cst_20 : f32 to vector<8x32xf32>
    %60 = arith.subf %59, %53 : vector<8x32xf32>
    %61 = arith.mulf %60, %58 : vector<8x32xf32>
    %62 = arith.mulf %53, %36 : vector<8x32xf32>
    %63 = arith.addf %61, %62 : vector<8x32xf32>
    %c2_i32 = arith.constant 2 : i32
    %c8_i32_21 = arith.constant 8 : i32
    %64 = arith.muli %c2_i32, %c8_i32_21 : i32
    %65 = tpu.assume_multiple %64, 8 : i32
    %66 = arith.index_cast %65 : i32 to index
    %c0_22 = arith.constant 0 : index
    %67 = vector.load %arg7[%66, %c0_22] : memref<64x96xf32, #tpu.memory_space<vmem>>, vector<8x96xf32>
    %cst_23 = arith.constant dense<0.000000e+00> : vector<8x96xf32>
    %68 = tpu.matmul %63, %7, %cst_23 {dimension_numbers = #tpu.dot_dimension_numbers<[1], [0], [0], [1], [0, 0, 1, 1], [], []>} : vector<8x32xf32>, vector<32x96xf32>, vector<8x96xf32> -> vector<8x96xf32>
    %69 = vector.broadcast %8 : vector<1x96xf32> to vector<8x96xf32>
    %70 = arith.addf %68, %69 : vector<8x96xf32>
    %71 = vector.extract_strided_slice %67 {offsets = [0, 0], sizes = [8, 64], strides = [1, 1]} : vector<8x96xf32> to vector<8x64xf32>
    %72 = vector.extract_strided_slice %70 {offsets = [0, 0], sizes = [8, 64], strides = [1, 1]} : vector<8x96xf32> to vector<8x64xf32>
    %73 = arith.addf %71, %72 : vector<8x64xf32>
    %74 = arith.negf %73 : vector<8x64xf32>
    %75 = math.exp %74 : vector<8x64xf32>
    %cst_24 = arith.constant 1.000000e+00 : f32
    %76 = vector.broadcast %cst_24 : f32 to vector<8x64xf32>
    %77 = arith.addf %76, %75 : vector<8x64xf32>
    %78 = arith.divf %76, %77 : vector<8x64xf32>
    %79 = vector.extract_strided_slice %78 {offsets = [0, 0], sizes = [8, 32], strides = [1, 1]} : vector<8x64xf32> to vector<8x32xf32>
    %80 = vector.extract_strided_slice %78 {offsets = [0, 32], sizes = [8, 32], strides = [1, 1]} : vector<8x64xf32> to vector<8x32xf32>
    %81 = vector.extract_strided_slice %67 {offsets = [0, 64], sizes = [8, 32], strides = [1, 1]} : vector<8x96xf32> to vector<8x32xf32>
    %82 = vector.extract_strided_slice %70 {offsets = [0, 64], sizes = [8, 32], strides = [1, 1]} : vector<8x96xf32> to vector<8x32xf32>
    %83 = arith.mulf %79, %82 : vector<8x32xf32>
    %84 = arith.addf %81, %83 : vector<8x32xf32>
    %85 = math.tanh %84 : vector<8x32xf32>
    %cst_25 = arith.constant 1.000000e+00 : f32
    %86 = vector.broadcast %cst_25 : f32 to vector<8x32xf32>
    %87 = arith.subf %86, %80 : vector<8x32xf32>
    %88 = arith.mulf %87, %85 : vector<8x32xf32>
    %89 = arith.mulf %80, %63 : vector<8x32xf32>
    %90 = arith.addf %88, %89 : vector<8x32xf32>
    %c3_i32 = arith.constant 3 : i32
    %c8_i32_26 = arith.constant 8 : i32
    %91 = arith.muli %c3_i32, %c8_i32_26 : i32
    %92 = tpu.assume_multiple %91, 8 : i32
    %93 = arith.index_cast %92 : i32 to index
    %c0_27 = arith.constant 0 : index
    %94 = vector.load %arg7[%93, %c0_27] : memref<64x96xf32, #tpu.memory_space<vmem>>, vector<8x96xf32>
    %cst_28 = arith.constant dense<0.000000e+00> : vector<8x96xf32>
    %95 = tpu.matmul %90, %7, %cst_28 {dimension_numbers = #tpu.dot_dimension_numbers<[1], [0], [0], [1], [0, 0, 1, 1], [], []>} : vector<8x32xf32>, vector<32x96xf32>, vector<8x96xf32> -> vector<8x96xf32>
    %96 = vector.broadcast %8 : vector<1x96xf32> to vector<8x96xf32>
    %97 = arith.addf %95, %96 : vector<8x96xf32>
    %98 = vector.extract_strided_slice %94 {offsets = [0, 0], sizes = [8, 64], strides = [1, 1]} : vector<8x96xf32> to vector<8x64xf32>
    %99 = vector.extract_strided_slice %97 {offsets = [0, 0], sizes = [8, 64], strides = [1, 1]} : vector<8x96xf32> to vector<8x64xf32>
    %100 = arith.addf %98, %99 : vector<8x64xf32>
    %101 = arith.negf %100 : vector<8x64xf32>
    %102 = math.exp %101 : vector<8x64xf32>
    %cst_29 = arith.constant 1.000000e+00 : f32
    %103 = vector.broadcast %cst_29 : f32 to vector<8x64xf32>
    %104 = arith.addf %103, %102 : vector<8x64xf32>
    %105 = arith.divf %103, %104 : vector<8x64xf32>
    %106 = vector.extract_strided_slice %105 {offsets = [0, 0], sizes = [8, 32], strides = [1, 1]} : vector<8x64xf32> to vector<8x32xf32>
    %107 = vector.extract_strided_slice %105 {offsets = [0, 32], sizes = [8, 32], strides = [1, 1]} : vector<8x64xf32> to vector<8x32xf32>
    %108 = vector.extract_strided_slice %94 {offsets = [0, 64], sizes = [8, 32], strides = [1, 1]} : vector<8x96xf32> to vector<8x32xf32>
    %109 = vector.extract_strided_slice %97 {offsets = [0, 64], sizes = [8, 32], strides = [1, 1]} : vector<8x96xf32> to vector<8x32xf32>
    %110 = arith.mulf %106, %109 : vector<8x32xf32>
    %111 = arith.addf %108, %110 : vector<8x32xf32>
    %112 = math.tanh %111 : vector<8x32xf32>
    %cst_30 = arith.constant 1.000000e+00 : f32
    %113 = vector.broadcast %cst_30 : f32 to vector<8x32xf32>
    %114 = arith.subf %113, %107 : vector<8x32xf32>
    %115 = arith.mulf %114, %112 : vector<8x32xf32>
    %116 = arith.mulf %107, %90 : vector<8x32xf32>
    %117 = arith.addf %115, %116 : vector<8x32xf32>
    %c4_i32 = arith.constant 4 : i32
    %c8_i32_31 = arith.constant 8 : i32
    %118 = arith.muli %c4_i32, %c8_i32_31 : i32
    %119 = tpu.assume_multiple %118, 8 : i32
    %120 = arith.index_cast %119 : i32 to index
    %c0_32 = arith.constant 0 : index
    %121 = vector.load %arg7[%120, %c0_32] : memref<64x96xf32, #tpu.memory_space<vmem>>, vector<8x96xf32>
    %cst_33 = arith.constant dense<0.000000e+00> : vector<8x96xf32>
    %122 = tpu.matmul %117, %7, %cst_33 {dimension_numbers = #tpu.dot_dimension_numbers<[1], [0], [0], [1], [0, 0, 1, 1], [], []>} : vector<8x32xf32>, vector<32x96xf32>, vector<8x96xf32> -> vector<8x96xf32>
    %123 = vector.broadcast %8 : vector<1x96xf32> to vector<8x96xf32>
    %124 = arith.addf %122, %123 : vector<8x96xf32>
    %125 = vector.extract_strided_slice %121 {offsets = [0, 0], sizes = [8, 64], strides = [1, 1]} : vector<8x96xf32> to vector<8x64xf32>
    %126 = vector.extract_strided_slice %124 {offsets = [0, 0], sizes = [8, 64], strides = [1, 1]} : vector<8x96xf32> to vector<8x64xf32>
    %127 = arith.addf %125, %126 : vector<8x64xf32>
    %128 = arith.negf %127 : vector<8x64xf32>
    %129 = math.exp %128 : vector<8x64xf32>
    %cst_34 = arith.constant 1.000000e+00 : f32
    %130 = vector.broadcast %cst_34 : f32 to vector<8x64xf32>
    %131 = arith.addf %130, %129 : vector<8x64xf32>
    %132 = arith.divf %130, %131 : vector<8x64xf32>
    %133 = vector.extract_strided_slice %132 {offsets = [0, 0], sizes = [8, 32], strides = [1, 1]} : vector<8x64xf32> to vector<8x32xf32>
    %134 = vector.extract_strided_slice %132 {offsets = [0, 32], sizes = [8, 32], strides = [1, 1]} : vector<8x64xf32> to vector<8x32xf32>
    %135 = vector.extract_strided_slice %121 {offsets = [0, 64], sizes = [8, 32], strides = [1, 1]} : vector<8x96xf32> to vector<8x32xf32>
    %136 = vector.extract_strided_slice %124 {offsets = [0, 64], sizes = [8, 32], strides = [1, 1]} : vector<8x96xf32> to vector<8x32xf32>
    %137 = arith.mulf %133, %136 : vector<8x32xf32>
    %138 = arith.addf %135, %137 : vector<8x32xf32>
    %139 = math.tanh %138 : vector<8x32xf32>
    %cst_35 = arith.constant 1.000000e+00 : f32
    %140 = vector.broadcast %cst_35 : f32 to vector<8x32xf32>
    %141 = arith.subf %140, %134 : vector<8x32xf32>
    %142 = arith.mulf %141, %139 : vector<8x32xf32>
    %143 = arith.mulf %134, %117 : vector<8x32xf32>
    %144 = arith.addf %142, %143 : vector<8x32xf32>
    %c5_i32 = arith.constant 5 : i32
    %c8_i32_36 = arith.constant 8 : i32
    %145 = arith.muli %c5_i32, %c8_i32_36 : i32
    %146 = tpu.assume_multiple %145, 8 : i32
    %147 = arith.index_cast %146 : i32 to index
    %c0_37 = arith.constant 0 : index
    %148 = vector.load %arg7[%147, %c0_37] : memref<64x96xf32, #tpu.memory_space<vmem>>, vector<8x96xf32>
    %cst_38 = arith.constant dense<0.000000e+00> : vector<8x96xf32>
    %149 = tpu.matmul %144, %7, %cst_38 {dimension_numbers = #tpu.dot_dimension_numbers<[1], [0], [0], [1], [0, 0, 1, 1], [], []>} : vector<8x32xf32>, vector<32x96xf32>, vector<8x96xf32> -> vector<8x96xf32>
    %150 = vector.broadcast %8 : vector<1x96xf32> to vector<8x96xf32>
    %151 = arith.addf %149, %150 : vector<8x96xf32>
    %152 = vector.extract_strided_slice %148 {offsets = [0, 0], sizes = [8, 64], strides = [1, 1]} : vector<8x96xf32> to vector<8x64xf32>
    %153 = vector.extract_strided_slice %151 {offsets = [0, 0], sizes = [8, 64], strides = [1, 1]} : vector<8x96xf32> to vector<8x64xf32>
    %154 = arith.addf %152, %153 : vector<8x64xf32>
    %155 = arith.negf %154 : vector<8x64xf32>
    %156 = math.exp %155 : vector<8x64xf32>
    %cst_39 = arith.constant 1.000000e+00 : f32
    %157 = vector.broadcast %cst_39 : f32 to vector<8x64xf32>
    %158 = arith.addf %157, %156 : vector<8x64xf32>
    %159 = arith.divf %157, %158 : vector<8x64xf32>
    %160 = vector.extract_strided_slice %159 {offsets = [0, 0], sizes = [8, 32], strides = [1, 1]} : vector<8x64xf32> to vector<8x32xf32>
    %161 = vector.extract_strided_slice %159 {offsets = [0, 32], sizes = [8, 32], strides = [1, 1]} : vector<8x64xf32> to vector<8x32xf32>
    %162 = vector.extract_strided_slice %148 {offsets = [0, 64], sizes = [8, 32], strides = [1, 1]} : vector<8x96xf32> to vector<8x32xf32>
    %163 = vector.extract_strided_slice %151 {offsets = [0, 64], sizes = [8, 32], strides = [1, 1]} : vector<8x96xf32> to vector<8x32xf32>
    %164 = arith.mulf %160, %163 : vector<8x32xf32>
    %165 = arith.addf %162, %164 : vector<8x32xf32>
    %166 = math.tanh %165 : vector<8x32xf32>
    %cst_40 = arith.constant 1.000000e+00 : f32
    %167 = vector.broadcast %cst_40 : f32 to vector<8x32xf32>
    %168 = arith.subf %167, %161 : vector<8x32xf32>
    %169 = arith.mulf %168, %166 : vector<8x32xf32>
    %170 = arith.mulf %161, %144 : vector<8x32xf32>
    %171 = arith.addf %169, %170 : vector<8x32xf32>
    %c6_i32 = arith.constant 6 : i32
    %c8_i32_41 = arith.constant 8 : i32
    %172 = arith.muli %c6_i32, %c8_i32_41 : i32
    %173 = tpu.assume_multiple %172, 8 : i32
    %174 = arith.index_cast %173 : i32 to index
    %c0_42 = arith.constant 0 : index
    %175 = vector.load %arg7[%174, %c0_42] : memref<64x96xf32, #tpu.memory_space<vmem>>, vector<8x96xf32>
    %cst_43 = arith.constant dense<0.000000e+00> : vector<8x96xf32>
    %176 = tpu.matmul %171, %7, %cst_43 {dimension_numbers = #tpu.dot_dimension_numbers<[1], [0], [0], [1], [0, 0, 1, 1], [], []>} : vector<8x32xf32>, vector<32x96xf32>, vector<8x96xf32> -> vector<8x96xf32>
    %177 = vector.broadcast %8 : vector<1x96xf32> to vector<8x96xf32>
    %178 = arith.addf %176, %177 : vector<8x96xf32>
    %179 = vector.extract_strided_slice %175 {offsets = [0, 0], sizes = [8, 64], strides = [1, 1]} : vector<8x96xf32> to vector<8x64xf32>
    %180 = vector.extract_strided_slice %178 {offsets = [0, 0], sizes = [8, 64], strides = [1, 1]} : vector<8x96xf32> to vector<8x64xf32>
    %181 = arith.addf %179, %180 : vector<8x64xf32>
    %182 = arith.negf %181 : vector<8x64xf32>
    %183 = math.exp %182 : vector<8x64xf32>
    %cst_44 = arith.constant 1.000000e+00 : f32
    %184 = vector.broadcast %cst_44 : f32 to vector<8x64xf32>
    %185 = arith.addf %184, %183 : vector<8x64xf32>
    %186 = arith.divf %184, %185 : vector<8x64xf32>
    %187 = vector.extract_strided_slice %186 {offsets = [0, 0], sizes = [8, 32], strides = [1, 1]} : vector<8x64xf32> to vector<8x32xf32>
    %188 = vector.extract_strided_slice %186 {offsets = [0, 32], sizes = [8, 32], strides = [1, 1]} : vector<8x64xf32> to vector<8x32xf32>
    %189 = vector.extract_strided_slice %175 {offsets = [0, 64], sizes = [8, 32], strides = [1, 1]} : vector<8x96xf32> to vector<8x32xf32>
    %190 = vector.extract_strided_slice %178 {offsets = [0, 64], sizes = [8, 32], strides = [1, 1]} : vector<8x96xf32> to vector<8x32xf32>
    %191 = arith.mulf %187, %190 : vector<8x32xf32>
    %192 = arith.addf %189, %191 : vector<8x32xf32>
    %193 = math.tanh %192 : vector<8x32xf32>
    %cst_45 = arith.constant 1.000000e+00 : f32
    %194 = vector.broadcast %cst_45 : f32 to vector<8x32xf32>
    %195 = arith.subf %194, %188 : vector<8x32xf32>
    %196 = arith.mulf %195, %193 : vector<8x32xf32>
    %197 = arith.mulf %188, %171 : vector<8x32xf32>
    %198 = arith.addf %196, %197 : vector<8x32xf32>
    %c7_i32 = arith.constant 7 : i32
    %c8_i32_46 = arith.constant 8 : i32
    %199 = arith.muli %c7_i32, %c8_i32_46 : i32
    %200 = tpu.assume_multiple %199, 8 : i32
    %201 = arith.index_cast %200 : i32 to index
    %c0_47 = arith.constant 0 : index
    %202 = vector.load %arg7[%201, %c0_47] : memref<64x96xf32, #tpu.memory_space<vmem>>, vector<8x96xf32>
    %cst_48 = arith.constant dense<0.000000e+00> : vector<8x96xf32>
    %203 = tpu.matmul %198, %7, %cst_48 {dimension_numbers = #tpu.dot_dimension_numbers<[1], [0], [0], [1], [0, 0, 1, 1], [], []>} : vector<8x32xf32>, vector<32x96xf32>, vector<8x96xf32> -> vector<8x96xf32>
    %204 = vector.broadcast %8 : vector<1x96xf32> to vector<8x96xf32>
    %205 = arith.addf %203, %204 : vector<8x96xf32>
    %206 = vector.extract_strided_slice %202 {offsets = [0, 0], sizes = [8, 64], strides = [1, 1]} : vector<8x96xf32> to vector<8x64xf32>
    %207 = vector.extract_strided_slice %205 {offsets = [0, 0], sizes = [8, 64], strides = [1, 1]} : vector<8x96xf32> to vector<8x64xf32>
    %208 = arith.addf %206, %207 : vector<8x64xf32>
    %209 = arith.negf %208 : vector<8x64xf32>
    %210 = math.exp %209 : vector<8x64xf32>
    %cst_49 = arith.constant 1.000000e+00 : f32
    %211 = vector.broadcast %cst_49 : f32 to vector<8x64xf32>
    %212 = arith.addf %211, %210 : vector<8x64xf32>
    %213 = arith.divf %211, %212 : vector<8x64xf32>
    %214 = vector.extract_strided_slice %213 {offsets = [0, 0], sizes = [8, 32], strides = [1, 1]} : vector<8x64xf32> to vector<8x32xf32>
    %215 = vector.extract_strided_slice %213 {offsets = [0, 32], sizes = [8, 32], strides = [1, 1]} : vector<8x64xf32> to vector<8x32xf32>
    %216 = vector.extract_strided_slice %202 {offsets = [0, 64], sizes = [8, 32], strides = [1, 1]} : vector<8x96xf32> to vector<8x32xf32>
    %217 = vector.extract_strided_slice %205 {offsets = [0, 64], sizes = [8, 32], strides = [1, 1]} : vector<8x96xf32> to vector<8x32xf32>
    %218 = arith.mulf %214, %217 : vector<8x32xf32>
    %219 = arith.addf %216, %218 : vector<8x32xf32>
    %220 = math.tanh %219 : vector<8x32xf32>
    %cst_50 = arith.constant 1.000000e+00 : f32
    %221 = vector.broadcast %cst_50 : f32 to vector<8x32xf32>
    %222 = arith.subf %221, %215 : vector<8x32xf32>
    %223 = arith.mulf %222, %220 : vector<8x32xf32>
    %224 = arith.mulf %215, %198 : vector<8x32xf32>
    %225 = arith.addf %223, %224 : vector<8x32xf32>
    %c8_i32_51 = arith.constant 8 : i32
    %c0_52 = arith.constant 0 : index
    %c0_53 = arith.constant 0 : index
    %226 = vector.load %arg6[%c0_52, %c0_53] : memref<8x32xf32, #tpu.memory_space<vmem>>, vector<8x32xf32>
    tpu.vector_store %arg6[%c0_52, %c0_53], %225 {strides = array<i32>} : memref<8x32xf32, #tpu.memory_space<vmem>>, vector<8x32xf32>,
    return
  }
  func.func @transform_0(%arg0: i32) -> (i32, i32) {
    %c0_i32 = arith.constant 0 : i32
    %c0_i32_0 = arith.constant 0 : i32
    %c0_i32_1 = arith.constant 0 : i32
    return %c0_i32, %c0_i32_0 : i32, i32
  }
  func.func @transform_1(%arg0: i32) -> (i32, i32) {
    %c0_i32 = arith.constant 0 : i32
    %c0_i32_0 = arith.constant 0 : i32
    %c0_i32_1 = arith.constant 0 : i32
    return %c0_i32, %c0_i32_0 : i32, i32
  }
  func.func @transform_2(%arg0: i32) -> (i32, i32) {
    %c0_i32 = arith.constant 0 : i32
    %c0_i32_0 = arith.constant 0 : i32
    %c0_i32_1 = arith.constant 0 : i32
    return %c0_i32, %c0_i32_0 : i32, i32
  }
  func.func @transform_3(%arg0: i32) -> (i32, i32) {
    %c0_i32 = arith.constant 0 : i32
    %c0_i32_0 = arith.constant 0 : i32
    %c0_i32_1 = arith.constant 0 : i32
    return %c0_i32, %c0_i32_0 : i32, i32
  }
  func.func @transform_4(%arg0: i32) -> (i32, i32) {
    %c0_i32 = arith.constant 0 : i32
    %c0_i32_0 = arith.constant 0 : i32
    %c0_i32_1 = arith.constant 0 : i32
    return %c0_i32, %c0_i32_0 : i32, i32
  }
  func.func @transform_5(%arg0: i32) -> (i32, i32) {
    %c0_i32 = arith.constant 0 : i32
    %c0_i32_0 = arith.constant 0 : i32
    %c0_i32_1 = arith.constant 0 : i32
    return %c0_i32, %c0_i32_0 : i32, i32
  }
}

</mosaic_0001>

<llo_original>
// kernel: tpu_custom_call.1
$region0: #{tpu_custom_call.1}
  #allocation0 [shape = 'u32[]', space=smem, size = 0x4, offset = 0x4, fixed_abs, tag = 'smem constant byte address 0x4 - core index']
  #allocation1 [shape = 'u32[144,128]{1,0:T(1,128)}', space=vmem, size = 0x12000, scoped, tag = 'internal scratch']
  #allocation2 [shape = 'f32[64,96]{1,0:T(8,128)}', space=vmem, size = 0x8000, scoped, tag = 'scratch operand']
  %s0 = inlined_call_operand.vmem [shape: f32[64,16], index: 0, kind: input, shape index: {}]
  %s1 = inlined_call_operand.vmem [shape: f32[16,96], index: 1, kind: input, shape index: {}]
  %s2 = inlined_call_operand.vmem [shape: f32[32,96], index: 2, kind: input, shape index: {}]
  %s3 = inlined_call_operand.vmem [shape: f32[1,96], index: 3, kind: input, shape index: {}]
  %s4 = inlined_call_operand.vmem [shape: f32[1,96], index: 4, kind: input, shape index: {}]
  %s5 = inlined_call_operand.hbm [shape: f32[8,32], index: 5, kind: output, shape index: {}]
  %s6 = sld [smem:[#allocation0]]
  $region30: #{tpu_custom_call.1} parent=0
    _
  %s8 = ssub.s32 1, %s6
  %s9 = scalar_select 0, %s8, %s6
  $region1: #{tpu_custom_call.1} parent=0
    #allocation3 [shape = 'u8[4096]{0}', space=vmem, size = 0x1000, scoped, tag = 'output window, operand 0, single buffered']
    #allocation4 [shape = 's32[1]{0}', space=sflag, size = 0x4, scoped, tag = 'scoped memory for tpu_custom_call.1']
    %10 = vsyncpa [#allocation4], 0
    // Predicated region
    $region2: #{tpu_custom_call.1} parent=1 // pred_check
      _
    $region3: #{tpu_custom_call.1} parent=1 // pred_check_branch
      %12 = sbr.rel (0) target = $region5
    $region4: #{tpu_custom_call.1} parent=1 // pred_region
      _
    $region5: #{tpu_custom_call.1} parent=1 // pred_fallthru
      _
    // Predicated region
    $region6: #{tpu_custom_call.1} parent=1 // pred_check
      _
    $region7: #{tpu_custom_call.1} parent=1 // pred_check_branch
      %14 = sbr.rel (0) target = $region9
    $region8: #{tpu_custom_call.1} parent=1 // pred_region
      _
    $region9: #{tpu_custom_call.1} parent=1 // pred_fallthru
      _
    // Predicated region
    $region10: #{tpu_custom_call.1} parent=1 // pred_check
      _
    $region11: #{tpu_custom_call.1} parent=1 // pred_check_branch
      %16 = sbr.rel (0) target = $region13
    $region12: #{tpu_custom_call.1} parent=1 // pred_region
      _
    $region13: #{tpu_custom_call.1} parent=1 // pred_fallthru
      _
    // Predicated region
    $region14: #{tpu_custom_call.1} parent=1 // pred_check
      _
    $region15: #{tpu_custom_call.1} parent=1 // pred_check_branch
      %18 = sbr.rel (0) target = $region17
    $region16: #{tpu_custom_call.1} parent=1 // pred_region
      _
    $region17: #{tpu_custom_call.1} parent=1 // pred_fallthru
      _
    // Predicated region
    $region18: #{tpu_custom_call.1} parent=1 // pred_check
      _
    $region19: #{tpu_custom_call.1} parent=1 // pred_check_branch
      %20 = sbr.rel (0) target = $region21
    $region20: #{tpu_custom_call.1} parent=1 // pred_region
      _
    $region21: #{tpu_custom_call.1} parent=1 // pred_fallthru
      _
    %v21 = vld [vmem:[%s0] sm:$0xff]
    %v22 = vld [vmem:[%s0 + $0x8] sm:$0xff]
    %v23 = vld [vmem:[%s0 + $0x10] sm:$0xff]
    %v24 = vld [vmem:[%s0 + $0x18] sm:$0xff]
    %v25 = vld [vmem:[%s0 + $0x20] sm:$0xff]
    %v26 = vld [vmem:[%s0 + $0x28] sm:$0xff]
    %v27 = vld [vmem:[%s0 + $0x30] sm:$0xff]
    %v28 = vld [vmem:[%s0 + $0x38] sm:$0xff]
    %v29 = vld [vmem:[%s1] sm:$0xff]
    %v30 = vld [vmem:[%s1 + $0x8] sm:$0xff]
    %v31 = vld [vmem:[%s3] sm:$0x1]
    %v33 = vlaneseq
    %v34 = vshrl.u32 %v33, 7
    %v35 = vsub.s32 0, %v34
    %v36 = vrot.slane %v31, %v35
    %vm38 = vcmask 130048
    %v40 = vsel %vm38, %v21, 0
    %v43 = vsel %vm38, %v22, 0
    %v46 = vsel %vm38, %v23, 0
    %v49 = vsel %vm38, %v24, 0
    %v52 = vsel %vm38, %v25, 0
    %v55 = vsel %vm38, %v26, 0
    %v58 = vsel %vm38, %v27, 0
    %v61 = vsel %vm38, %v28, 0
    %63 = vmatprep.subr.mxu0 0.0
    %64 = vmatpush1.msra.mxu0 0.0
    %65 = vmatprep.subr.mxu0 0.0
    %66 = vmatpush1.msra.mxu0 0.0
    %67 = vmatprep.subr.mxu0 0.0
    %68 = vmatpush1.msra.mxu0 0.0
    %69 = vmatprep.subr.mxu0 0.0
    %70 = vmatpush1.msra.mxu0 0.0
    %71 = vmatprep.subr.mxu0 0.0
    %72 = vmatpush1.msra.mxu0 0.0
    %73 = vmatprep.subr.mxu0 0.0
    %74 = vmatpush1.msra.mxu0 0.0
    %75 = vmatprep.subr.mxu0 0.0
    %76 = vmatpush1.msra.mxu0 0.0
    %77 = vmatprep.subr.mxu0 0.0
    %78 = vmatpush1.msra.mxu0 0.0
    %79 = vmatprep.subr.mxu0 0.0
    %80 = vmatpush1.msra.mxu0 0.0
    %81 = vmatprep.subr.mxu0 0.0
    %82 = vmatpush1.msra.mxu0 0.0
    %83 = vmatprep.subr.mxu0 0.0
    %84 = vmatpush1.msra.mxu0 0.0
    %85 = vmatprep.subr.mxu0 0.0
    %86 = vmatpush1.msra.mxu0 0.0
    %87 = vmatprep.subr.mxu0 0.0
    %88 = vmatpush1.msra.mxu0 0.0
    %89 = vmatprep.subr.mxu0 0.0
    %90 = vmatpush1.msra.mxu0 0.0
    %91 = vmatprep.subr.mxu0 0.0
    %92 = vmatpush1.msra.mxu0 %v30
    %93 = vmatprep.subr.mxu0 0.0
    %94 = vmatpush1.msra.mxu0 %v29
    %95 = vmatprep.subr.mxu0 0.0
    %96 = vmatpush2.msra.mxu0 0.0
    %97 = vmatprep.subr.mxu0 0.0
    %98 = vmatpush2.msra.mxu0 0.0
    %99 = vmatprep.subr.mxu0 0.0
    %100 = vmatpush2.msra.mxu0 0.0
    %101 = vmatprep.subr.mxu0 0.0
    %102 = vmatpush2.msra.mxu0 0.0
    %103 = vmatprep.subr.mxu0 0.0
    %104 = vmatpush2.msra.mxu0 0.0
    %105 = vmatprep.subr.mxu0 0.0
    %106 = vmatpush2.msra.mxu0 0.0
    %107 = vmatprep.subr.mxu0 0.0
    %108 = vmatpush2.msra.mxu0 0.0
    %109 = vmatprep.subr.mxu0 0.0
    %110 = vmatpush2.msra.mxu0 0.0
    %111 = vmatprep.subr.mxu0 0.0
    %112 = vmatpush2.msra.mxu0 0.0
    %113 = vmatprep.subr.mxu0 0.0
    %114 = vmatpush2.msra.mxu0 0.0
    %115 = vmatprep.subr.mxu0 0.0
    %116 = vmatpush2.msra.mxu0 0.0
    %117 = vmatprep.subr.mxu0 0.0
    %118 = vmatpush2.msra.mxu0 0.0
    %119 = vmatprep.subr.mxu0 0.0
    %120 = vmatpush2.msra.mxu0 0.0
    %121 = vmatprep.subr.mxu0 0.0
    %122 = vmatpush2.msra.mxu0 0.0
    %123 = vmatprep.subr.mxu0 0.0
    %124 = vmatpush2.msra.mxu0 0.0
    %125 = vmatprep.subr.mxu0 0.0
    %126 = vmatpush2.msra.mxu0 0.0
    %127 = vmatprep.mubr.f32.mxu0 0.0
    %128 = vmatmul.mubr.f32.gmra.mxu0 %v40
    %v129 = vpop.f32.mrf.mxu0
    %v130 = vadd.f32 %v36, %v129
    %v131 = vpop.f32.mrf.mxu0
    %132 = vmatprep.mubr.f32.mxu0 0.0
    %133 = vmatmul.mubr.f32.gmra.mxu0 %v43
    %v134 = vpop.f32.mrf.mxu0
    %v135 = vadd.f32 %v36, %v134
    %v136 = vpop.f32.mrf.mxu0
    %137 = vmatprep.mubr.f32.mxu0 0.0
    %138 = vmatmul.mubr.f32.gmra.mxu0 %v46
    %v139 = vpop.f32.mrf.mxu0
    %v140 = vadd.f32 %v36, %v139
    %v141 = vpop.f32.mrf.mxu0
    %142 = vmatprep.mubr.f32.mxu0 0.0
    %143 = vmatmul.mubr.f32.gmra.mxu0 %v49
    %v144 = vpop.f32.mrf.mxu0
    %v145 = vadd.f32 %v36, %v144
    %v146 = vpop.f32.mrf.mxu0
    %147 = vmatprep.mubr.f32.mxu0 0.0
    %148 = vmatmul.mubr.f32.gmra.mxu0 %v52
    %v149 = vpop.f32.mrf.mxu0
    %v150 = vadd.f32 %v36, %v149
    %v151 = vpop.f32.mrf.mxu0
    %152 = vmatprep.mubr.f32.mxu0 0.0
    %153 = vmatmul.mubr.f32.gmra.mxu0 %v55
    %v154 = vpop.f32.mrf.mxu0
    %v155 = vadd.f32 %v36, %v154
    %v156 = vpop.f32.mrf.mxu0
    %157 = vmatprep.mubr.f32.mxu0 0.0
    %158 = vmatmul.mubr.f32.gmra.mxu0 %v58
    %v159 = vpop.f32.mrf.mxu0
    %v160 = vadd.f32 %v36, %v159
    %v161 = vpop.f32.mrf.mxu0
    %162 = vmatprep.mubr.f32.mxu0 0.0
    %163 = vmatmul.mubr.f32.gmra.mxu0 %v61
    %v164 = vpop.f32.mrf.mxu0
    %v165 = vadd.f32 %v36, %v164
    %v166 = vpop.f32.mrf.mxu0
    %167 = vdwg.mxu0
    %vm168 = vcmask 785408
    %169 = vst.msk [vmem:[#allocation2] sm:$0xff] %vm168, %v130
    %170 = vst.msk [vmem:[#allocation2 + $0x8] sm:$0xff] %vm168, %v135
    %171 = vst.msk [vmem:[#allocation2 + $0x10] sm:$0xff] %vm168, %v140
    %172 = vst.msk [vmem:[#allocation2 + $0x18] sm:$0xff] %vm168, %v145
    %173 = vst.msk [vmem:[#allocation2 + $0x20] sm:$0xff] %vm168, %v150
    %174 = vst.msk [vmem:[#allocation2 + $0x28] sm:$0xff] %vm168, %v155
    %175 = vst.msk [vmem:[#allocation2 + $0x30] sm:$0xff] %vm168, %v160
    %176 = vst.msk [vmem:[#allocation2 + $0x38] sm:$0xff] %vm168, %v165
    %v177 = vld [vmem:[%s2] sm:$0xff]
    %v178 = vld [vmem:[%s2 + $0x8] sm:$0xff]
    %v179 = vld [vmem:[%s2 + $0x10] sm:$0xff]
    %v180 = vld [vmem:[%s2 + $0x18] sm:$0xff]
    %v181 = vld [vmem:[%s4] sm:$0x1]
    %v182 = vld [vmem:[#allocation2] sm:$0xff]
    %v184 = vlaneseq
    %v185 = vshrl.u32 %v184, 7
    %v186 = vsub.s32 0, %v185
    %v187 = vrot.slane %v181, %v186
    %vm189 = vcmask 261120
    %v191 = vsel %vm189, 0.0, 0
    %193 = vmatprep.subr.mxu0 0.0
    %194 = vmatpush1.msra.mxu0 0.0
    %195 = vmatprep.subr.mxu0 0.0
    %196 = vmatpush1.msra.mxu0 0.0
    %197 = vmatprep.subr.mxu0 0.0
    %198 = vmatpush1.msra.mxu0 0.0
    %199 = vmatprep.subr.mxu0 0.0
    %200 = vmatpush1.msra.mxu0 0.0
    %201 = vmatprep.subr.mxu0 0.0
    %202 = vmatpush1.msra.mxu0 0.0
    %203 = vmatprep.subr.mxu0 0.0
    %204 = vmatpush1.msra.mxu0 0.0
    %205 = vmatprep.subr.mxu0 0.0
    %206 = vmatpush1.msra.mxu0 0.0
    %207 = vmatprep.subr.mxu0 0.0
    %208 = vmatpush1.msra.mxu0 0.0
    %209 = vmatprep.subr.mxu0 0.0
    %210 = vmatpush1.msra.mxu0 0.0
    %211 = vmatprep.subr.mxu0 0.0
    %212 = vmatpush1.msra.mxu0 0.0
    %213 = vmatprep.subr.mxu0 0.0
    %214 = vmatpush1.msra.mxu0 0.0
    %215 = vmatprep.subr.mxu0 0.0
    %216 = vmatpush1.msra.mxu0 0.0
    %217 = vmatprep.subr.mxu0 0.0
    %218 = vmatpush1.msra.mxu0 %v180
    %219 = vmatprep.subr.mxu0 0.0
    %220 = vmatpush1.msra.mxu0 %v179
    %221 = vmatprep.subr.mxu0 0.0
    %222 = vmatpush1.msra.mxu0 %v178
    %223 = vmatprep.subr.mxu0 0.0
    %224 = vmatpush1.msra.mxu0 %v177
    %225 = vmatprep.subr.mxu0 0.0
    %226 = vmatpush2.msra.mxu0 0.0
    %227 = vmatprep.subr.mxu0 0.0
    %228 = vmatpush2.msra.mxu0 0.0
    %229 = vmatprep.subr.mxu0 0.0
    %230 = vmatpush2.msra.mxu0 0.0
    %231 = vmatprep.subr.mxu0 0.0
    %232 = vmatpush2.msra.mxu0 0.0
    %233 = vmatprep.subr.mxu0 0.0
    %234 = vmatpush2.msra.mxu0 0.0
    %235 = vmatprep.subr.mxu0 0.0
    %236 = vmatpush2.msra.mxu0 0.0
    %237 = vmatprep.subr.mxu0 0.0
    %238 = vmatpush2.msra.mxu0 0.0
    %239 = vmatprep.subr.mxu0 0.0
    %240 = vmatpush2.msra.mxu0 0.0
    %241 = vmatprep.subr.mxu0 0.0
    %242 = vmatpush2.msra.mxu0 0.0
    %243 = vmatprep.subr.mxu0 0.0
    %244 = vmatpush2.msra.mxu0 0.0
    %245 = vmatprep.subr.mxu0 0.0
    %246 = vmatpush2.msra.mxu0 0.0
    %247 = vmatprep.subr.mxu0 0.0
    %248 = vmatpush2.msra.mxu0 0.0
    %249 = vmatprep.subr.mxu0 0.0
    %250 = vmatpush2.msra.mxu0 0.0
    %251 = vmatprep.subr.mxu0 0.0
    %252 = vmatpush2.msra.mxu0 0.0
    %253 = vmatprep.subr.mxu0 0.0
    %254 = vmatpush2.msra.mxu0 0.0
    %255 = vmatprep.subr.mxu0 0.0
    %256 = vmatpush2.msra.mxu0 0.0
    %257 = vmatprep.mubr.f32.mxu0 0.0
    %258 = vmatmul.mubr.f32.gmra.mxu0 %v191
    %v259 = vpop.f32.mrf.mxu0
    %v260 = vadd.f32 %v187, %v259
    %v261 = vpop.f32.mrf.mxu0
    %262 = vdwg.mxu0
    %v263 = vadd.f32 %v182, %v260
    %v264 = vxor.u32 %v263, 2147483648
    %v265 = vmul.f32 %v264, 1.442695
    %v266 = vpow.pop %v265
    %v267 = vadd.f32 %v266, 1.0
    %v268 = vrcp.pop %v267
    %v269 = vmul.f32 1.0, %v268
    %271 = vrot.lane.b32.xlu0 %v260, 64
    %v272 = vpop.permute.xlu0 %271
    %v274 = vmul.f32 %v269, %v272
    %276 = vrot.lane.b32.xlu0 %v274, 64
    %v277 = vpop.permute.xlu0 %276
    %v279 = vadd.f32 %v182, %v277
    %v280 = vtanh.pop %v279
    %v281 = vsub.f32 1.0, %v269
    %283 = vrot.lane.b32.xlu0 %v280, 96
    %v284 = vpop.permute.xlu0 %283
    %v286 = vmul.f32 %v281, %v284
    %v287 = vmul.f32 %v269, 0.0
    %v288 = vadd.f32 %v286, %v287
    %s289 = scalar_lea.vmem [#allocation2], 8
    %v290 = vld [vmem:[%s289] sm:$0xff]
    %292 = vrot.lane.b32.xlu0 %v288, 96
    %v293 = vpop.permute.xlu0 %292
    %v294 = vsel %vm189, %v293, 0
    %296 = vmatprep.subr.mxu0 0.0
    %297 = vmatpush1.msra.mxu0 0.0
    %298 = vmatprep.subr.mxu0 0.0
    %299 = vmatpush1.msra.mxu0 0.0
    %300 = vmatprep.subr.mxu0 0.0
    %301 = vmatpush1.msra.mxu0 0.0
    %302 = vmatprep.subr.mxu0 0.0
    %303 = vmatpush1.msra.mxu0 0.0
    %304 = vmatprep.subr.mxu0 0.0
    %305 = vmatpush1.msra.mxu0 0.0
    %306 = vmatprep.subr.mxu0 0.0
    %307 = vmatpush1.msra.mxu0 0.0
    %308 = vmatprep.subr.mxu0 0.0
    %309 = vmatpush1.msra.mxu0 0.0
    %310 = vmatprep.subr.mxu0 0.0
    %311 = vmatpush1.msra.mxu0 0.0
    %312 = vmatprep.subr.mxu0 0.0
    %313 = vmatpush1.msra.mxu0 0.0
    %314 = vmatprep.subr.mxu0 0.0
    %315 = vmatpush1.msra.mxu0 0.0
    %316 = vmatprep.subr.mxu0 0.0
    %317 = vmatpush1.msra.mxu0 0.0
    %318 = vmatprep.subr.mxu0 0.0
    %319 = vmatpush1.msra.mxu0 0.0
    %320 = vmatprep.subr.mxu0 0.0
    %321 = vmatpush1.msra.mxu0 %v180
    %322 = vmatprep.subr.mxu0 0.0
    %323 = vmatpush1.msra.mxu0 %v179
    %324 = vmatprep.subr.mxu0 0.0
    %325 = vmatpush1.msra.mxu0 %v178
    %326 = vmatprep.subr.mxu0 0.0
    %327 = vmatpush1.msra.mxu0 %v177
    %328 = vmatprep.subr.mxu0 0.0
    %329 = vmatpush2.msra.mxu0 0.0
    %330 = vmatprep.subr.mxu0 0.0
    %331 = vmatpush2.msra.mxu0 0.0
    %332 = vmatprep.subr.mxu0 0.0
    %333 = vmatpush2.msra.mxu0 0.0
    %334 = vmatprep.subr.mxu0 0.0
    %335 = vmatpush2.msra.mxu0 0.0
    %336 = vmatprep.subr.mxu0 0.0
    %337 = vmatpush2.msra.mxu0 0.0
    %338 = vmatprep.subr.mxu0 0.0
    %339 = vmatpush2.msra.mxu0 0.0
    %340 = vmatprep.subr.mxu0 0.0
    %341 = vmatpush2.msra.mxu0 0.0
    %342 = vmatprep.subr.mxu0 0.0
    %343 = vmatpush2.msra.mxu0 0.0
    %344 = vmatprep.subr.mxu0 0.0
    %345 = vmatpush2.msra.mxu0 0.0
    %346 = vmatprep.subr.mxu0 0.0
    %347 = vmatpush2.msra.mxu0 0.0
    %348 = vmatprep.subr.mxu0 0.0
    %349 = vmatpush2.msra.mxu0 0.0
    %350 = vmatprep.subr.mxu0 0.0
    %351 = vmatpush2.msra.mxu0 0.0
    %352 = vmatprep.subr.mxu0 0.0
    %353 = vmatpush2.msra.mxu0 0.0
    %354 = vmatprep.subr.mxu0 0.0
    %355 = vmatpush2.msra.mxu0 0.0
    %356 = vmatprep.subr.mxu0 0.0
    %357 = vmatpush2.msra.mxu0 0.0
    %358 = vmatprep.subr.mxu0 0.0
    %359 = vmatpush2.msra.mxu0 0.0
    %360 = vmatprep.mubr.f32.mxu0 0.0
    %361 = vmatmul.mubr.f32.gmra.mxu0 %v294
    %v362 = vpop.f32.mrf.mxu0
    %v363 = vadd.f32 %v187, %v362
    %v364 = vpop.f32.mrf.mxu0
    %365 = vdwg.mxu0
    %v366 = vadd.f32 %v290, %v363
    %v367 = vxor.u32 %v366, 2147483648
    %v368 = vmul.f32 %v367, 1.442695
    %v369 = vpow.pop %v368
    %v370 = vadd.f32 %v369, 1.0
    %v371 = vrcp.pop %v370
    %v372 = vmul.f32 1.0, %v371
    %374 = vrot.lane.b32.xlu0 %v363, 64
    %v375 = vpop.permute.xlu0 %374
    %v377 = vmul.f32 %v372, %v375
    %379 = vrot.lane.b32.xlu0 %v377, 64
    %v380 = vpop.permute.xlu0 %379
    %v382 = vadd.f32 %v290, %v380
    %v383 = vtanh.pop %v382
    %v384 = vsub.f32 1.0, %v372
    %386 = vrot.lane.b32.xlu0 %v383, 96
    %v387 = vpop.permute.xlu0 %386
    %v389 = vmul.f32 %v384, %v387
    %v390 = vmul.f32 %v372, %v288
    %v391 = vadd.f32 %v389, %v390
    %s392 = scalar_lea.vmem [#allocation2], 16
    %v393 = vld [vmem:[%s392] sm:$0xff]
    %395 = vrot.lane.b32.xlu0 %v391, 96
    %v396 = vpop.permute.xlu0 %395
    %v397 = vsel %vm189, %v396, 0
    %399 = vmatprep.subr.mxu0 0.0
    %400 = vmatpush1.msra.mxu0 0.0
    %401 = vmatprep.subr.mxu0 0.0
    %402 = vmatpush1.msra.mxu0 0.0
    %403 = vmatprep.subr.mxu0 0.0
    %404 = vmatpush1.msra.mxu0 0.0
    %405 = vmatprep.subr.mxu0 0.0
    %406 = vmatpush1.msra.mxu0 0.0
    %407 = vmatprep.subr.mxu0 0.0
    %408 = vmatpush1.msra.mxu0 0.0
    %409 = vmatprep.subr.mxu0 0.0
    %410 = vmatpush1.msra.mxu0 0.0
    %411 = vmatprep.subr.mxu0 0.0
    %412 = vmatpush1.msra.mxu0 0.0
    %413 = vmatprep.subr.mxu0 0.0
    %414 = vmatpush1.msra.mxu0 0.0
    %415 = vmatprep.subr.mxu0 0.0
    %416 = vmatpush1.msra.mxu0 0.0
    %417 = vmatprep.subr.mxu0 0.0
    %418 = vmatpush1.msra.mxu0 0.0
    %419 = vmatprep.subr.mxu0 0.0
    %420 = vmatpush1.msra.mxu0 0.0
    %421 = vmatprep.subr.mxu0 0.0
    %422 = vmatpush1.msra.mxu0 0.0
    %423 = vmatprep.subr.mxu0 0.0
    %424 = vmatpush1.msra.mxu0 %v180
    %425 = vmatprep.subr.mxu0 0.0
    %426 = vmatpush1.msra.mxu0 %v179
    %427 = vmatprep.subr.mxu0 0.0
    %428 = vmatpush1.msra.mxu0 %v178
    %429 = vmatprep.subr.mxu0 0.0
    %430 = vmatpush1.msra.mxu0 %v177
    %431 = vmatprep.subr.mxu0 0.0
    %432 = vmatpush2.msra.mxu0 0.0
    %433 = vmatprep.subr.mxu0 0.0
    %434 = vmatpush2.msra.mxu0 0.0
    %435 = vmatprep.subr.mxu0 0.0
    %436 = vmatpush2.msra.mxu0 0.0
    %437 = vmatprep.subr.mxu0 0.0
    %438 = vmatpush2.msra.mxu0 0.0
    %439 = vmatprep.subr.mxu0 0.0
    %440 = vmatpush2.msra.mxu0 0.0
    %441 = vmatprep.subr.mxu0 0.0
    %442 = vmatpush2.msra.mxu0 0.0
    %443 = vmatprep.subr.mxu0 0.0
    %444 = vmatpush2.msra.mxu0 0.0
    %445 = vmatprep.subr.mxu0 0.0
    %446 = vmatpush2.msra.mxu0 0.0
    %447 = vmatprep.subr.mxu0 0.0
    %448 = vmatpush2.msra.mxu0 0.0
    %449 = vmatprep.subr.mxu0 0.0
    %450 = vmatpush2.msra.mxu0 0.0
    %451 = vmatprep.subr.mxu0 0.0
    %452 = vmatpush2.msra.mxu0 0.0
    %453 = vmatprep.subr.mxu0 0.0
    %454 = vmatpush2.msra.mxu0 0.0
    %455 = vmatprep.subr.mxu0 0.0
    %456 = vmatpush2.msra.mxu0 0.0
    %457 = vmatprep.subr.mxu0 0.0
    %458 = vmatpush2.msra.mxu0 0.0
    %459 = vmatprep.subr.mxu0 0.0
    %460 = vmatpush2.msra.mxu0 0.0
    %461 = vmatprep.subr.mxu0 0.0
    %462 = vmatpush2.msra.mxu0 0.0
    %463 = vmatprep.mubr.f32.mxu0 0.0
    %464 = vmatmul.mubr.f32.gmra.mxu0 %v397
    %v465 = vpop.f32.mrf.mxu0
    %v466 = vadd.f32 %v187, %v465
    %v467 = vpop.f32.mrf.mxu0
    %468 = vdwg.mxu0
    %v469 = vadd.f32 %v393, %v466
    %v470 = vxor.u32 %v469, 2147483648
    %v471 = vmul.f32 %v470, 1.442695
    %v472 = vpow.pop %v471
    %v473 = vadd.f32 %v472, 1.0
    %v474 = vrcp.pop %v473
    %v475 = vmul.f32 1.0, %v474
    %477 = vrot.lane.b32.xlu0 %v466, 64
    %v478 = vpop.permute.xlu0 %477
    %v480 = vmul.f32 %v475, %v478
    %482 = vrot.lane.b32.xlu0 %v480, 64
    %v483 = vpop.permute.xlu0 %482
    %v485 = vadd.f32 %v393, %v483
    %v486 = vtanh.pop %v485
    %v487 = vsub.f32 1.0, %v475
    %489 = vrot.lane.b32.xlu0 %v486, 96
    %v490 = vpop.permute.xlu0 %489
    %v492 = vmul.f32 %v487, %v490
    %v493 = vmul.f32 %v475, %v391
    %v494 = vadd.f32 %v492, %v493
    %s495 = scalar_lea.vmem [#allocation2], 24
    %v496 = vld [vmem:[%s495] sm:$0xff]
    %498 = vrot.lane.b32.xlu0 %v494, 96
    %v499 = vpop.permute.xlu0 %498
    %v500 = vsel %vm189, %v499, 0
    %502 = vmatprep.subr.mxu0 0.0
    %503 = vmatpush1.msra.mxu0 0.0
    %504 = vmatprep.subr.mxu0 0.0
    %505 = vmatpush1.msra.mxu0 0.0
    %506 = vmatprep.subr.mxu0 0.0
    %507 = vmatpush1.msra.mxu0 0.0
    %508 = vmatprep.subr.mxu0 0.0
    %509 = vmatpush1.msra.mxu0 0.0
    %510 = vmatprep.subr.mxu0 0.0
    %511 = vmatpush1.msra.mxu0 0.0
    %512 = vmatprep.subr.mxu0 0.0
    %513 = vmatpush1.msra.mxu0 0.0
    %514 = vmatprep.subr.mxu0 0.0
    %515 = vmatpush1.msra.mxu0 0.0
    %516 = vmatprep.subr.mxu0 0.0
    %517 = vmatpush1.msra.mxu0 0.0
    %518 = vmatprep.subr.mxu0 0.0
    %519 = vmatpush1.msra.mxu0 0.0
    %520 = vmatprep.subr.mxu0 0.0
    %521 = vmatpush1.msra.mxu0 0.0
    %522 = vmatprep.subr.mxu0 0.0
    %523 = vmatpush1.msra.mxu0 0.0
    %524 = vmatprep.subr.mxu0 0.0
    %525 = vmatpush1.msra.mxu0 0.0
    %526 = vmatprep.subr.mxu0 0.0
    %527 = vmatpush1.msra.mxu0 %v180
    %528 = vmatprep.subr.mxu0 0.0
    %529 = vmatpush1.msra.mxu0 %v179
    %530 = vmatprep.subr.mxu0 0.0
    %531 = vmatpush1.msra.mxu0 %v178
    %532 = vmatprep.subr.mxu0 0.0
    %533 = vmatpush1.msra.mxu0 %v177
    %534 = vmatprep.subr.mxu0 0.0
    %535 = vmatpush2.msra.mxu0 0.0
    %536 = vmatprep.subr.mxu0 0.0
    %537 = vmatpush2.msra.mxu0 0.0
    %538 = vmatprep.subr.mxu0 0.0
    %539 = vmatpush2.msra.mxu0 0.0
    %540 = vmatprep.subr.mxu0 0.0
    %541 = vmatpush2.msra.mxu0 0.0
    %542 = vmatprep.subr.mxu0 0.0
    %543 = vmatpush2.msra.mxu0 0.0
    %544 = vmatprep.subr.mxu0 0.0
    %545 = vmatpush2.msra.mxu0 0.0
    %546 = vmatprep.subr.mxu0 0.0
    %547 = vmatpush2.msra.mxu0 0.0
    %548 = vmatprep.subr.mxu0 0.0
    %549 = vmatpush2.msra.mxu0 0.0
    %550 = vmatprep.subr.mxu0 0.0
    %551 = vmatpush2.msra.mxu0 0.0
    %552 = vmatprep.subr.mxu0 0.0
    %553 = vmatpush2.msra.mxu0 0.0
    %554 = vmatprep.subr.mxu0 0.0
    %555 = vmatpush2.msra.mxu0 0.0
    %556 = vmatprep.subr.mxu0 0.0
    %557 = vmatpush2.msra.mxu0 0.0
    %558 = vmatprep.subr.mxu0 0.0
    %559 = vmatpush2.msra.mxu0 0.0
    %560 = vmatprep.subr.mxu0 0.0
    %561 = vmatpush2.msra.mxu0 0.0
    %562 = vmatprep.subr.mxu0 0.0
    %563 = vmatpush2.msra.mxu0 0.0
    %564 = vmatprep.subr.mxu0 0.0
    %565 = vmatpush2.msra.mxu0 0.0
    %566 = vmatprep.mubr.f32.mxu0 0.0
    %567 = vmatmul.mubr.f32.gmra.mxu0 %v500
    %v568 = vpop.f32.mrf.mxu0
    %v569 = vadd.f32 %v187, %v568
    %v570 = vpop.f32.mrf.mxu0
    %571 = vdwg.mxu0
    %v572 = vadd.f32 %v496, %v569
    %v573 = vxor.u32 %v572, 2147483648
    %v574 = vmul.f32 %v573, 1.442695
    %v575 = vpow.pop %v574
    %v576 = vadd.f32 %v575, 1.0
    %v577 = vrcp.pop %v576
    %v578 = vmul.f32 1.0, %v577
    %580 = vrot.lane.b32.xlu0 %v569, 64
    %v581 = vpop.permute.xlu0 %580
    %v583 = vmul.f32 %v578, %v581
    %585 = vrot.lane.b32.xlu0 %v583, 64
    %v586 = vpop.permute.xlu0 %585
    %v588 = vadd.f32 %v496, %v586
    %v589 = vtanh.pop %v588
    %v590 = vsub.f32 1.0, %v578
    %592 = vrot.lane.b32.xlu0 %v589, 96
    %v593 = vpop.permute.xlu0 %592
    %v595 = vmul.f32 %v590, %v593
    %v596 = vmul.f32 %v578, %v494
    %v597 = vadd.f32 %v595, %v596
    %s598 = scalar_lea.vmem [#allocation2], 32
    %v599 = vld [vmem:[%s598] sm:$0xff]
    %601 = vrot.lane.b32.xlu0 %v597, 96
    %v602 = vpop.permute.xlu0 %601
    %v603 = vsel %vm189, %v602, 0
    %605 = vmatprep.subr.mxu0 0.0
    %606 = vmatpush1.msra.mxu0 0.0
    %607 = vmatprep.subr.mxu0 0.0
    %608 = vmatpush1.msra.mxu0 0.0
    %609 = vmatprep.subr.mxu0 0.0
    %610 = vmatpush1.msra.mxu0 0.0
    %611 = vmatprep.subr.mxu0 0.0
    %612 = vmatpush1.msra.mxu0 0.0
    %613 = vmatprep.subr.mxu0 0.0
    %614 = vmatpush1.msra.mxu0 0.0
    %615 = vmatprep.subr.mxu0 0.0
    %616 = vmatpush1.msra.mxu0 0.0
    %617 = vmatprep.subr.mxu0 0.0
    %618 = vmatpush1.msra.mxu0 0.0
    %619 = vmatprep.subr.mxu0 0.0
    %620 = vmatpush1.msra.mxu0 0.0
    %621 = vmatprep.subr.mxu0 0.0
    %622 = vmatpush1.msra.mxu0 0.0
    %623 = vmatprep.subr.mxu0 0.0
    %624 = vmatpush1.msra.mxu0 0.0
    %625 = vmatprep.subr.mxu0 0.0
    %626 = vmatpush1.msra.mxu0 0.0
    %627 = vmatprep.subr.mxu0 0.0
    %628 = vmatpush1.msra.mxu0 0.0
    %629 = vmatprep.subr.mxu0 0.0
    %630 = vmatpush1.msra.mxu0 %v180
    %631 = vmatprep.subr.mxu0 0.0
    %632 = vmatpush1.msra.mxu0 %v179
    %633 = vmatprep.subr.mxu0 0.0
    %634 = vmatpush1.msra.mxu0 %v178
    %635 = vmatprep.subr.mxu0 0.0
    %636 = vmatpush1.msra.mxu0 %v177
    %637 = vmatprep.subr.mxu0 0.0
    %638 = vmatpush2.msra.mxu0 0.0
    %639 = vmatprep.subr.mxu0 0.0
    %640 = vmatpush2.msra.mxu0 0.0
    %641 = vmatprep.subr.mxu0 0.0
    %642 = vmatpush2.msra.mxu0 0.0
    %643 = vmatprep.subr.mxu0 0.0
    %644 = vmatpush2.msra.mxu0 0.0
    %645 = vmatprep.subr.mxu0 0.0
    %646 = vmatpush2.msra.mxu0 0.0
    %647 = vmatprep.subr.mxu0 0.0
    %648 = vmatpush2.msra.mxu0 0.0
    %649 = vmatprep.subr.mxu0 0.0
    %650 = vmatpush2.msra.mxu0 0.0
    %651 = vmatprep.subr.mxu0 0.0
    %652 = vmatpush2.msra.mxu0 0.0
    %653 = vmatprep.subr.mxu0 0.0
    %654 = vmatpush2.msra.mxu0 0.0
    %655 = vmatprep.subr.mxu0 0.0
    %656 = vmatpush2.msra.mxu0 0.0
    %657 = vmatprep.subr.mxu0 0.0
    %658 = vmatpush2.msra.mxu0 0.0
    %659 = vmatprep.subr.mxu0 0.0
    %660 = vmatpush2.msra.mxu0 0.0
    %661 = vmatprep.subr.mxu0 0.0
    %662 = vmatpush2.msra.mxu0 0.0
    %663 = vmatprep.subr.mxu0 0.0
    %664 = vmatpush2.msra.mxu0 0.0
    %665 = vmatprep.subr.mxu0 0.0
    %666 = vmatpush2.msra.mxu0 0.0
    %667 = vmatprep.subr.mxu0 0.0
    %668 = vmatpush2.msra.mxu0 0.0
    %669 = vmatprep.mubr.f32.mxu0 0.0
    %670 = vmatmul.mubr.f32.gmra.mxu0 %v603
    %v671 = vpop.f32.mrf.mxu0
    %v672 = vadd.f32 %v187, %v671
    %v673 = vpop.f32.mrf.mxu0
    %674 = vdwg.mxu0
    %v675 = vadd.f32 %v599, %v672
    %v676 = vxor.u32 %v675, 2147483648
    %v677 = vmul.f32 %v676, 1.442695
    %v678 = vpow.pop %v677
    %v679 = vadd.f32 %v678, 1.0
    %v680 = vrcp.pop %v679
    %v681 = vmul.f32 1.0, %v680
    %683 = vrot.lane.b32.xlu0 %v672, 64
    %v684 = vpop.permute.xlu0 %683
    %v686 = vmul.f32 %v681, %v684
    %688 = vrot.lane.b32.xlu0 %v686, 64
    %v689 = vpop.permute.xlu0 %688
    %v691 = vadd.f32 %v599, %v689
    %v692 = vtanh.pop %v691
    %v693 = vsub.f32 1.0, %v681
    %695 = vrot.lane.b32.xlu0 %v692, 96
    %v696 = vpop.permute.xlu0 %695
    %v698 = vmul.f32 %v693, %v696
    %v699 = vmul.f32 %v681, %v597
    %v700 = vadd.f32 %v698, %v699
    %s701 = scalar_lea.vmem [#allocation2], 40
    %v702 = vld [vmem:[%s701] sm:$0xff]
    %704 = vrot.lane.b32.xlu0 %v700, 96
    %v705 = vpop.permute.xlu0 %704
    %v706 = vsel %vm189, %v705, 0
    %708 = vmatprep.subr.mxu0 0.0
    %709 = vmatpush1.msra.mxu0 0.0
    %710 = vmatprep.subr.mxu0 0.0
    %711 = vmatpush1.msra.mxu0 0.0
    %712 = vmatprep.subr.mxu0 0.0
    %713 = vmatpush1.msra.mxu0 0.0
    %714 = vmatprep.subr.mxu0 0.0
    %715 = vmatpush1.msra.mxu0 0.0
    %716 = vmatprep.subr.mxu0 0.0
    %717 = vmatpush1.msra.mxu0 0.0
    %718 = vmatprep.subr.mxu0 0.0
    %719 = vmatpush1.msra.mxu0 0.0
    %720 = vmatprep.subr.mxu0 0.0
    %721 = vmatpush1.msra.mxu0 0.0
    %722 = vmatprep.subr.mxu0 0.0
    %723 = vmatpush1.msra.mxu0 0.0
    %724 = vmatprep.subr.mxu0 0.0
    %725 = vmatpush1.msra.mxu0 0.0
    %726 = vmatprep.subr.mxu0 0.0
    %727 = vmatpush1.msra.mxu0 0.0
    %728 = vmatprep.subr.mxu0 0.0
    %729 = vmatpush1.msra.mxu0 0.0
    %730 = vmatprep.subr.mxu0 0.0
    %731 = vmatpush1.msra.mxu0 0.0
    %732 = vmatprep.subr.mxu0 0.0
    %733 = vmatpush1.msra.mxu0 %v180
    %734 = vmatprep.subr.mxu0 0.0
    %735 = vmatpush1.msra.mxu0 %v179
    %736 = vmatprep.subr.mxu0 0.0
    %737 = vmatpush1.msra.mxu0 %v178
    %738 = vmatprep.subr.mxu0 0.0
    %739 = vmatpush1.msra.mxu0 %v177
    %740 = vmatprep.subr.mxu0 0.0
    %741 = vmatpush2.msra.mxu0 0.0
    %742 = vmatprep.subr.mxu0 0.0
    %743 = vmatpush2.msra.mxu0 0.0
    %744 = vmatprep.subr.mxu0 0.0
    %745 = vmatpush2.msra.mxu0 0.0
    %746 = vmatprep.subr.mxu0 0.0
    %747 = vmatpush2.msra.mxu0 0.0
    %748 = vmatprep.subr.mxu0 0.0
    %749 = vmatpush2.msra.mxu0 0.0
    %750 = vmatprep.subr.mxu0 0.0
    %751 = vmatpush2.msra.mxu0 0.0
    %752 = vmatprep.subr.mxu0 0.0
    %753 = vmatpush2.msra.mxu0 0.0
    %754 = vmatprep.subr.mxu0 0.0
    %755 = vmatpush2.msra.mxu0 0.0
    %756 = vmatprep.subr.mxu0 0.0
    %757 = vmatpush2.msra.mxu0 0.0
    %758 = vmatprep.subr.mxu0 0.0
    %759 = vmatpush2.msra.mxu0 0.0
    %760 = vmatprep.subr.mxu0 0.0
    %761 = vmatpush2.msra.mxu0 0.0
    %762 = vmatprep.subr.mxu0 0.0
    %763 = vmatpush2.msra.mxu0 0.0
    %764 = vmatprep.subr.mxu0 0.0
    %765 = vmatpush2.msra.mxu0 0.0
    %766 = vmatprep.subr.mxu0 0.0
    %767 = vmatpush2.msra.mxu0 0.0
    %768 = vmatprep.subr.mxu0 0.0
    %769 = vmatpush2.msra.mxu0 0.0
    %770 = vmatprep.subr.mxu0 0.0
    %771 = vmatpush2.msra.mxu0 0.0
    %772 = vmatprep.mubr.f32.mxu0 0.0
    %773 = vmatmul.mubr.f32.gmra.mxu0 %v706
    %v774 = vpop.f32.mrf.mxu0
    %v775 = vadd.f32 %v187, %v774
    %v776 = vpop.f32.mrf.mxu0
    %777 = vdwg.mxu0
    %v778 = vadd.f32 %v702, %v775
    %v779 = vxor.u32 %v778, 2147483648
    %v780 = vmul.f32 %v779, 1.442695
    %v781 = vpow.pop %v780
    %v782 = vadd.f32 %v781, 1.0
    %v783 = vrcp.pop %v782
    %v784 = vmul.f32 1.0, %v783
    %786 = vrot.lane.b32.xlu0 %v775, 64
    %v787 = vpop.permute.xlu0 %786
    %v789 = vmul.f32 %v784, %v787
    %791 = vrot.lane.b32.xlu0 %v789, 64
    %v792 = vpop.permute.xlu0 %791
    %v794 = vadd.f32 %v702, %v792
    %v795 = vtanh.pop %v794
    %v796 = vsub.f32 1.0, %v784
    %798 = vrot.lane.b32.xlu0 %v795, 96
    %v799 = vpop.permute.xlu0 %798
    %v801 = vmul.f32 %v796, %v799
    %v802 = vmul.f32 %v784, %v700
    %v803 = vadd.f32 %v801, %v802
    %s804 = scalar_lea.vmem [#allocation2], 48
    %v805 = vld [vmem:[%s804] sm:$0xff]
    %807 = vrot.lane.b32.xlu0 %v803, 96
    %v808 = vpop.permute.xlu0 %807
    %v809 = vsel %vm189, %v808, 0
    %811 = vmatprep.subr.mxu0 0.0
    %812 = vmatpush1.msra.mxu0 0.0
    %813 = vmatprep.subr.mxu0 0.0
    %814 = vmatpush1.msra.mxu0 0.0
    %815 = vmatprep.subr.mxu0 0.0
    %816 = vmatpush1.msra.mxu0 0.0
    %817 = vmatprep.subr.mxu0 0.0
    %818 = vmatpush1.msra.mxu0 0.0
    %819 = vmatprep.subr.mxu0 0.0
    %820 = vmatpush1.msra.mxu0 0.0
    %821 = vmatprep.subr.mxu0 0.0
    %822 = vmatpush1.msra.mxu0 0.0
    %823 = vmatprep.subr.mxu0 0.0
    %824 = vmatpush1.msra.mxu0 0.0
    %825 = vmatprep.subr.mxu0 0.0
    %826 = vmatpush1.msra.mxu0 0.0
    %827 = vmatprep.subr.mxu0 0.0
    %828 = vmatpush1.msra.mxu0 0.0
    %829 = vmatprep.subr.mxu0 0.0
    %830 = vmatpush1.msra.mxu0 0.0
    %831 = vmatprep.subr.mxu0 0.0
    %832 = vmatpush1.msra.mxu0 0.0
    %833 = vmatprep.subr.mxu0 0.0
    %834 = vmatpush1.msra.mxu0 0.0
    %835 = vmatprep.subr.mxu0 0.0
    %836 = vmatpush1.msra.mxu0 %v180
    %837 = vmatprep.subr.mxu0 0.0
    %838 = vmatpush1.msra.mxu0 %v179
    %839 = vmatprep.subr.mxu0 0.0
    %840 = vmatpush1.msra.mxu0 %v178
    %841 = vmatprep.subr.mxu0 0.0
    %842 = vmatpush1.msra.mxu0 %v177
    %843 = vmatprep.subr.mxu0 0.0
    %844 = vmatpush2.msra.mxu0 0.0
    %845 = vmatprep.subr.mxu0 0.0
    %846 = vmatpush2.msra.mxu0 0.0
    %847 = vmatprep.subr.mxu0 0.0
    %848 = vmatpush2.msra.mxu0 0.0
    %849 = vmatprep.subr.mxu0 0.0
    %850 = vmatpush2.msra.mxu0 0.0
    %851 = vmatprep.subr.mxu0 0.0
    %852 = vmatpush2.msra.mxu0 0.0
    %853 = vmatprep.subr.mxu0 0.0
    %854 = vmatpush2.msra.mxu0 0.0
    %855 = vmatprep.subr.mxu0 0.0
    %856 = vmatpush2.msra.mxu0 0.0
    %857 = vmatprep.subr.mxu0 0.0
    %858 = vmatpush2.msra.mxu0 0.0
    %859 = vmatprep.subr.mxu0 0.0
    %860 = vmatpush2.msra.mxu0 0.0
    %861 = vmatprep.subr.mxu0 0.0
    %862 = vmatpush2.msra.mxu0 0.0
    %863 = vmatprep.subr.mxu0 0.0
    %864 = vmatpush2.msra.mxu0 0.0
    %865 = vmatprep.subr.mxu0 0.0
    %866 = vmatpush2.msra.mxu0 0.0
    %867 = vmatprep.subr.mxu0 0.0
    %868 = vmatpush2.msra.mxu0 0.0
    %869 = vmatprep.subr.mxu0 0.0
    %870 = vmatpush2.msra.mxu0 0.0
    %871 = vmatprep.subr.mxu0 0.0
    %872 = vmatpush2.msra.mxu0 0.0
    %873 = vmatprep.subr.mxu0 0.0
    %874 = vmatpush2.msra.mxu0 0.0
    %875 = vmatprep.mubr.f32.mxu0 0.0
    %876 = vmatmul.mubr.f32.gmra.mxu0 %v809
    %v877 = vpop.f32.mrf.mxu0
    %v878 = vadd.f32 %v187, %v877
    %v879 = vpop.f32.mrf.mxu0
    %880 = vdwg.mxu0
    %v881 = vadd.f32 %v805, %v878
    %v882 = vxor.u32 %v881, 2147483648
    %v883 = vmul.f32 %v882, 1.442695
    %v884 = vpow.pop %v883
    %v885 = vadd.f32 %v884, 1.0
    %v886 = vrcp.pop %v885
    %v887 = vmul.f32 1.0, %v886
    %889 = vrot.lane.b32.xlu0 %v878, 64
    %v890 = vpop.permute.xlu0 %889
    %v892 = vmul.f32 %v887, %v890
    %894 = vrot.lane.b32.xlu0 %v892, 64
    %v895 = vpop.permute.xlu0 %894
    %v897 = vadd.f32 %v805, %v895
    %v898 = vtanh.pop %v897
    %v899 = vsub.f32 1.0, %v887
    %901 = vrot.lane.b32.xlu0 %v898, 96
    %v902 = vpop.permute.xlu0 %901
    %v904 = vmul.f32 %v899, %v902
    %v905 = vmul.f32 %v887, %v803
    %v906 = vadd.f32 %v904, %v905
    %s907 = scalar_lea.vmem [#allocation2], 56
    %v908 = vld [vmem:[%s907] sm:$0xff]
    %910 = vrot.lane.b32.xlu0 %v906, 96
    %v911 = vpop.permute.xlu0 %910
    %v912 = vsel %vm189, %v911, 0
    %914 = vmatprep.subr.mxu0 0.0
    %915 = vmatpush1.msra.mxu0 0.0
    %916 = vmatprep.subr.mxu0 0.0
    %917 = vmatpush1.msra.mxu0 0.0
    %918 = vmatprep.subr.mxu0 0.0
    %919 = vmatpush1.msra.mxu0 0.0
    %920 = vmatprep.subr.mxu0 0.0
    %921 = vmatpush1.msra.mxu0 0.0
    %922 = vmatprep.subr.mxu0 0.0
    %923 = vmatpush1.msra.mxu0 0.0
    %924 = vmatprep.subr.mxu0 0.0
    %925 = vmatpush1.msra.mxu0 0.0
    %926 = vmatprep.subr.mxu0 0.0
    %927 = vmatpush1.msra.mxu0 0.0
    %928 = vmatprep.subr.mxu0 0.0
    %929 = vmatpush1.msra.mxu0 0.0
    %930 = vmatprep.subr.mxu0 0.0
    %931 = vmatpush1.msra.mxu0 0.0
    %932 = vmatprep.subr.mxu0 0.0
    %933 = vmatpush1.msra.mxu0 0.0
    %934 = vmatprep.subr.mxu0 0.0
    %935 = vmatpush1.msra.mxu0 0.0
    %936 = vmatprep.subr.mxu0 0.0
    %937 = vmatpush1.msra.mxu0 0.0
    %938 = vmatprep.subr.mxu0 0.0
    %939 = vmatpush1.msra.mxu0 %v180
    %940 = vmatprep.subr.mxu0 0.0
    %941 = vmatpush1.msra.mxu0 %v179
    %942 = vmatprep.subr.mxu0 0.0
    %943 = vmatpush1.msra.mxu0 %v178
    %944 = vmatprep.subr.mxu0 0.0
    %945 = vmatpush1.msra.mxu0 %v177
    %946 = vmatprep.subr.mxu0 0.0
    %947 = vmatpush2.msra.mxu0 0.0
    %948 = vmatprep.subr.mxu0 0.0
    %949 = vmatpush2.msra.mxu0 0.0
    %950 = vmatprep.subr.mxu0 0.0
    %951 = vmatpush2.msra.mxu0 0.0
    %952 = vmatprep.subr.mxu0 0.0
    %953 = vmatpush2.msra.mxu0 0.0
    %954 = vmatprep.subr.mxu0 0.0
    %955 = vmatpush2.msra.mxu0 0.0
    %956 = vmatprep.subr.mxu0 0.0
    %957 = vmatpush2.msra.mxu0 0.0
    %958 = vmatprep.subr.mxu0 0.0
    %959 = vmatpush2.msra.mxu0 0.0
    %960 = vmatprep.subr.mxu0 0.0
    %961 = vmatpush2.msra.mxu0 0.0
    %962 = vmatprep.subr.mxu0 0.0
    %963 = vmatpush2.msra.mxu0 0.0
    %964 = vmatprep.subr.mxu0 0.0
    %965 = vmatpush2.msra.mxu0 0.0
    %966 = vmatprep.subr.mxu0 0.0
    %967 = vmatpush2.msra.mxu0 0.0
    %968 = vmatprep.subr.mxu0 0.0
    %969 = vmatpush2.msra.mxu0 0.0
    %970 = vmatprep.subr.mxu0 0.0
    %971 = vmatpush2.msra.mxu0 0.0
    %972 = vmatprep.subr.mxu0 0.0
    %973 = vmatpush2.msra.mxu0 0.0
    %974 = vmatprep.subr.mxu0 0.0
    %975 = vmatpush2.msra.mxu0 0.0
    %976 = vmatprep.subr.mxu0 0.0
    %977 = vmatpush2.msra.mxu0 0.0
    %978 = vmatprep.mubr.f32.mxu0 0.0
    %979 = vmatmul.mubr.f32.gmra.mxu0 %v912
    %v980 = vpop.f32.mrf.mxu0
    %v981 = vadd.f32 %v187, %v980
    %v982 = vpop.f32.mrf.mxu0
    %983 = vdwg.mxu0
    %v984 = vadd.f32 %v908, %v981
    %v985 = vxor.u32 %v984, 2147483648
    %v986 = vmul.f32 %v985, 1.442695
    %v987 = vpow.pop %v986
    %v988 = vadd.f32 %v987, 1.0
    %v989 = vrcp.pop %v988
    %v990 = vmul.f32 1.0, %v989
    %992 = vrot.lane.b32.xlu0 %v981, 64
    %v993 = vpop.permute.xlu0 %992
    %v995 = vmul.f32 %v990, %v993
    %997 = vrot.lane.b32.xlu0 %v995, 64
    %v998 = vpop.permute.xlu0 %997
    %v1000 = vadd.f32 %v908, %v998
    %v1001 = vtanh.pop %v1000
    %v1002 = vsub.f32 1.0, %v990
    %1004 = vrot.lane.b32.xlu0 %v1001, 96
    %v1005 = vpop.permute.xlu0 %1004
    %v1007 = vmul.f32 %v1002, %v1005
    %v1008 = vmul.f32 %v990, %v906
    %v1009 = vadd.f32 %v1007, %v1008
    %1011 = vrot.lane.b32.xlu0 %v1009, 96
    %v1012 = vpop.permute.xlu0 %1011
    %1014 = vst.msk [vmem:[#allocation3] sm:$0xff] %vm189, %v1012
    // Predicated region
    $region22: #{tpu_custom_call.1} parent=1 // pred_check
      _
    $region23: #{tpu_custom_call.1} parent=1 // pred_check_branch
      %1016 = sbr.rel (0) target = $region25
    $region24: #{tpu_custom_call.1} parent=1 // pred_region
      %s1018 = ssub.s32 128, 128
      %1019 = vsyncadd [#allocation4], %s1018
      %s1021 = sshll.u32 [#allocation3], 4
      %s1022 = int_to_ptr.vmem [resolvable:$true] %s1021
      %1024 = dma.vmem_to_hbm [thread:$0]  %s1022, 128, %s5, [#allocation4]
    $region25: #{tpu_custom_call.1} parent=1 // pred_fallthru
      _
    // Predicated region
    $region26: #{tpu_custom_call.1} parent=1 // pred_check
      _
    $region27: #{tpu_custom_call.1} parent=1 // pred_check_branch
      %1026 = sbr.rel (0) target = $region29
    $region28: #{tpu_custom_call.1} parent=1 // pred_region
      %1027 = dma.done [#allocation4], 128
    $region29: #{tpu_custom_call.1} parent=1 // pred_fallthru
      _
    %1028 = vsyncpa [#allocation4], 1

</llo_original>
